<compile_context>
chip_gen: v7x
topology: tpu7x:2x2x1
jax: 0.10.0
libtpu: 0.0.40
codegen_flags: <defaults>
</compile_context>

<pallas_src>
import jax
import jax.numpy as jnp
from jax.experimental import pallas as pl
from jax.experimental.pallas import tpu as pltpu


def _make_att_kernel(t_valid, t_pad):
    """Kernel factory; t_valid/t_pad are static so the time-padding mask is
    only emitted when the time axis was actually padded."""

    def kernel(x_ref, w_ref, b_ref, u_ref, out_ref):
        # x_ref: (BB, Tp, H), w_ref: (H, A), b_ref: (1, A), u_ref: (1, A)
        # out_ref: (BB, H)
        BB, Tp, H = x_ref.shape
        A = w_ref.shape[1]

        x = x_ref[...]
        w = w_ref[...]
        b = b_ref[...]
        u = u_ref[...]

        # One large MXU matmul over all BB*Tp rows.  Tp is a multiple of the
        # sublane tile and the lane (H) dim is untouched -> reshape is free.
        x2 = x.reshape(BB * Tp, H)
        v = jnp.tanh(jnp.dot(x2, w, preferred_element_type=jnp.float32) + b)

        # vu = v @ u_omega (N == 1): VPU multiply + lane reduce, no MXU.
        v3 = v.reshape(BB, Tp, A)                      # lane dim unchanged -> free
        vu = jnp.sum(v3 * u, axis=-1)                  # (BB, Tp) f32

        # Mask padded time steps so they get zero attention weight.
        if t_pad != t_valid:
            t_ids = jax.lax.broadcasted_iota(jnp.int32, (BB, Tp), 1)
            vu = jnp.where(t_ids < t_valid, vu, jnp.float32(-1e30))

        # Softmax over time (dim=1 of the original module), exact normalization.
        m = jnp.max(vu, axis=-1, keepdims=True)        # (BB, 1)
        e = jnp.exp(vu - m)                            # (BB, Tp)
        denom = jnp.sum(e, axis=-1, keepdims=True)     # (BB, 1)
        alphas = e / denom                             # (BB, Tp)

        # Weighted sum over time.
        out = jnp.sum(x.astype(jnp.float32) * alphas[:, :, None], axis=1)
        out_ref[...] = out.astype(out_ref.dtype)

    return kernel


def _vmem_capacity_bytes():
    """Physical VMEM per TensorCore; conservative (v7x-sized) fallback."""
    try:
        cap = getattr(pltpu.get_tpu_info(), "vmem_capacity_bytes", None)
        if cap:
            return int(cap)
    except Exception:
        pass
    return 64 * 1024 * 1024


def _choose_blocking(B, T, H, itemsize):
    """Pick (BB, B_pad, T_pad, vmem_limit) with padding-aware VMEM accounting."""
    sub = {4: 8, 2: 16, 1: 32}.get(itemsize, 8)        # sublane tile for dtype
    t_pad = pl.cdiv(T, sub) * sub
    h_lanes = pl.cdiv(H, 128) * 128

    vmem_cap = _vmem_capacity_bytes()
    # Scoped limit: ~75% of physical, at least 8 MiB headroom, >= 32 MiB floor.
    vmem_limit = max(min(int(vmem_cap * 0.75), vmem_cap - (8 << 20)), 32 << 20)
    # Per-step x block budget: 2x (double buffer) + ~2.5x f32 temporaries
    # (v matrix, x*alphas product) + params/output  ->  ~1/5 of scoped limit.
    x_block_budget = max(vmem_limit // 5, 1 << 20)

    per_row = t_pad * h_lanes * itemsize               # padded bytes per batch row
    bb_cap = max(1, x_block_budget // per_row)

    if B <= bb_cap:
        bb = B                                         # single full-dim block
    else:
        # Sublane-aligned block; if even `sub` rows exceed the budget we still
        # take `sub` and rely on the vmem_limit headroom.
        bb = max(sub, (min(bb_cap, B) // sub) * sub)
    b_pad = pl.cdiv(B, bb) * bb
    return bb, b_pad, t_pad, vmem_limit


def simple_att_layer(x, w_omega, b_omega, u_omega):
    """Forward pass of SimpleAttLayer (time_major=False, return_alphas=False).

    x: (B, T, H); w_omega: (H, A); b_omega: (A,); u_omega: (A, 1) -> (B, H).
    """
    B, T, H = x.shape
    A = w_omega.shape[1]
    itemsize = jnp.dtype(x.dtype).itemsize

    bb, b_pad, t_pad, vmem_limit = _choose_blocking(B, T, H, itemsize)

    # Pad batch/time so blocks are sublane-aligned and in-kernel reshapes are
    # free.  Padded time steps are masked inside the kernel; padded batch rows
    # are sliced off below.  This is a no-op when already aligned.
    if (b_pad, t_pad) != (B, T):
        x = jnp.pad(x, ((0, b_pad - B), (0, t_pad - T), (0, 0)))

    b2d = b_omega.reshape(1, A).astype(jnp.float32)
    u_row = u_omega.reshape(1, A).astype(jnp.float32)
    w2d = w_omega.astype(jnp.float32)

    grid = (b_pad // bb,)

    cost = pl.CostEstimate(
        flops=2 * b_pad * t_pad * H * A + 2 * b_pad * t_pad * A
        + 2 * b_pad * t_pad * H,
        transcendentals=b_pad * t_pad * A + b_pad * t_pad,
        bytes_accessed=(b_pad * t_pad * H + H * A + 2 * A + b_pad * H) * itemsize,
    )

    out = pl.pallas_call(
        _make_att_kernel(T, t_pad),
        out_shape=jax.ShapeDtypeStruct((b_pad, H), x.dtype),
        grid_spec=pltpu.PrefetchScalarGridSpec(
            num_scalar_prefetch=0,
            grid=grid,
            in_specs=[
                pl.BlockSpec((bb, t_pad, H), lambda b: (b, 0, 0)),
                pl.BlockSpec((H, A), lambda b: (0, 0)),
                pl.BlockSpec((1, A), lambda b: (0, 0)),
                pl.BlockSpec((1, A), lambda b: (0, 0)),
            ],
            out_specs=pl.BlockSpec((bb, H), lambda b: (b, 0)),
        ),
        # TODO(synk): on v7x, switch the batch axis to pltpu.CORE_PARALLEL (or a
        # pl.core_map over the 2-TC mesh) so both TensorCores' HBM paths are used.
        compiler_params=pltpu.CompilerParams(
            dimension_semantics=("parallel",),
            vmem_limit_bytes=vmem_limit,
        ),
        cost_estimate=cost,
    )(x, w2d, b2d, u_row)

    if b_pad != B:
        out = out[:B]
    return out


def _xavier_uniform(key, shape, dtype=jnp.float32):
    fan_in, fan_out = shape[0], shape[1]
    bound = (6.0 / (fan_in + fan_out)) ** 0.5
    return jax.random.uniform(key, shape, dtype, minval=-bound, maxval=bound)


def _reference(x, w_omega, b_omega, u_omega):
    v = jnp.tanh(jnp.einsum("bth,ha->bta", x, w_omega) + b_omega)
    vu = jnp.einsum("bta,ao->bto", v, u_omega)               # (B, T, 1)
    alphas = jax.nn.softmax(vu, axis=1)
    return jnp.sum(x * alphas, axis=1)                       # (B, H)


if __name__ == "__main__":
    B, T, H, A = 2, 8, 32, 16
    key = jax.random.PRNGKey(0)
    kx, kw, ku = jax.random.split(key, 3)

    x = jax.random.normal(kx, (B, T, H), dtype=jnp.float32)
    w_omega = _xavier_uniform(kw, (H, A))
    b_omega = jnp.zeros((A,), dtype=jnp.float32)
    u_omega = _xavier_uniform(ku, (A, 1))

    out = simple_att_layer(x, w_omega, b_omega, u_omega)
    out = jax.block_until_ready(out)

    ref = _reference(x, w_omega, b_omega, u_omega)
    assert out.shape == (B, H)
    assert jnp.allclose(out, ref, atol=1e-3, rtol=1e-3), "mismatch vs reference"

    print("KERNEL_OK")
</pallas_src>

<mosaic_0001>
module attributes {stable_mosaic.version = 11 : i64} {
  func.func @kernel(%arg0: i32, %arg1: memref<2x8x32xf32, #tpu.memory_space<vmem>>, %arg2: memref<32x16xf32, #tpu.memory_space<vmem>>, %arg3: memref<1x16xf32, #tpu.memory_space<vmem>>, %arg4: memref<1x16xf32, #tpu.memory_space<vmem>>, %arg5: memref<2x32xf32, #tpu.memory_space<vmem>>) attributes {dimension_semantics = [#tpu.dimension_semantics<parallel>], iteration_bounds = array<i64: 1>, scalar_prefetch = 0 : i64, scratch_operands = 0 : i64, tpu.core_type = #tpu.core_type<tc>, window_params = [{transform_indices = @transform_0, window_bounds = array<i64: 2, 8, 32>}, {pipeline_mode = #tpu.pipeline_mode<synchronous>, transform_indices = @transform_1, window_bounds = array<i64: 32, 16>}, {pipeline_mode = #tpu.pipeline_mode<synchronous>, transform_indices = @transform_2, window_bounds = array<i64: 1, 16>}, {pipeline_mode = #tpu.pipeline_mode<synchronous>, transform_indices = @transform_3, window_bounds = array<i64: 1, 16>}, {transform_indices = @transform_4, window_bounds = array<i64: 2, 32>}]} {
    %c0 = arith.constant 0 : index
    %c0_0 = arith.constant 0 : index
    %c0_1 = arith.constant 0 : index
    %0 = vector.load %arg1[%c0, %c0_0, %c0_1] : memref<2x8x32xf32, #tpu.memory_space<vmem>>, vector<2x8x32xf32>
    %c0_2 = arith.constant 0 : index
    %c0_3 = arith.constant 0 : index
    %1 = vector.load %arg2[%c0_2, %c0_3] : memref<32x16xf32, #tpu.memory_space<vmem>>, vector<32x16xf32>
    %c0_4 = arith.constant 0 : index
    %c0_5 = arith.constant 0 : index
    %2 = vector.load %arg3[%c0_4, %c0_5] : memref<1x16xf32, #tpu.memory_space<vmem>>, vector<1x16xf32>
    %c0_6 = arith.constant 0 : index
    %c0_7 = arith.constant 0 : index
    %3 = vector.load %arg4[%c0_6, %c0_7] : memref<1x16xf32, #tpu.memory_space<vmem>>, vector<1x16xf32>
    %4 = vector.shape_cast %0 : vector<2x8x32xf32> to vector<16x32xf32>
    %cst = arith.constant dense<0.000000e+00> : vector<16x16xf32>
    %5 = tpu.matmul %4, %1, %cst {dimension_numbers = #tpu.dot_dimension_numbers<[1], [0], [0], [1], [0, 0, 1, 1], [], []>} : vector<16x32xf32>, vector<32x16xf32>, vector<16x16xf32> -> vector<16x16xf32>
    %6 = vector.broadcast %2 : vector<1x16xf32> to vector<16x16xf32>
    %7 = arith.addf %5, %6 : vector<16x16xf32>
    %8 = math.tanh %7 : vector<16x16xf32>
    %9 = vector.shape_cast %8 : vector<16x16xf32> to vector<2x8x16xf32>
    %10 = vector.shape_cast %3 : vector<1x16xf32> to vector<1x1x16xf32>
    %11 = vector.broadcast %10 : vector<1x1x16xf32> to vector<2x8x16xf32>
    %12 = arith.mulf %9, %11 : vector<2x8x16xf32>
    %cst_8 = arith.constant dense<0.000000e+00> : vector<2x8xf32>
    %13 = vector.multi_reduction <add>, %12, %cst_8 [2] : vector<2x8x16xf32> to vector<2x8xf32>
    %cst_9 = arith.constant dense<0xFF800000> : vector<2xf32>
    %14 = vector.multi_reduction <maximumf>, %13, %cst_9 [1] : vector<2x8xf32> to vector<2xf32>
    %15 = vector.shape_cast %14 : vector<2xf32> to vector<2x1xf32>
    %16 = vector.broadcast %15 : vector<2x1xf32> to vector<2x8xf32>
    %17 = arith.subf %13, %16 : vector<2x8xf32>
    %18 = math.exp %17 : vector<2x8xf32>
    %cst_10 = arith.constant dense<0.000000e+00> : vector<2xf32>
    %19 = vector.multi_reduction <add>, %18, %cst_10 [1] : vector<2x8xf32> to vector<2xf32>
    %20 = vector.shape_cast %19 : vector<2xf32> to vector<2x1xf32>
    %21 = vector.broadcast %20 : vector<2x1xf32> to vector<2x8xf32>
    %22 = arith.divf %18, %21 : vector<2x8xf32>
    %23 = vector.shape_cast %22 : vector<2x8xf32> to vector<2x8x1xf32>
    %24 = vector.broadcast %23 : vector<2x8x1xf32> to vector<2x8x32xf32>
    %25 = arith.mulf %0, %24 : vector<2x8x32xf32>
    %cst_11 = arith.constant dense<0.000000e+00> : vector<2x32xf32>
    %26 = vector.multi_reduction <add>, %25, %cst_11 [1] : vector<2x8x32xf32> to vector<2x32xf32>
    %c0_12 = arith.constant 0 : index
    %c0_13 = arith.constant 0 : index
    %27 = vector.load %arg5[%c0_12, %c0_13] : memref<2x32xf32, #tpu.memory_space<vmem>>, vector<2x32xf32>
    tpu.vector_store %arg5[%c0_12, %c0_13], %26 {strides = array<i32>} : memref<2x32xf32, #tpu.memory_space<vmem>>, vector<2x32xf32>,
    return
  }
  func.func @transform_0(%arg0: i32) -> (i32, i32, i32) {
    %c0_i32 = arith.constant 0 : i32
    %c0_i32_0 = arith.constant 0 : i32
    %c0_i32_1 = arith.constant 0 : i32
    return %arg0, %c0_i32, %c0_i32_0 : i32, i32, i32
  }
  func.func @transform_1(%arg0: i32) -> (i32, i32) {
    %c0_i32 = arith.constant 0 : i32
    %c0_i32_0 = arith.constant 0 : i32
    %c0_i32_1 = arith.constant 0 : i32
    return %c0_i32, %c0_i32_0 : i32, i32
  }
  func.func @transform_2(%arg0: i32) -> (i32, i32) {
    %c0_i32 = arith.constant 0 : i32
    %c0_i32_0 = arith.constant 0 : i32
    %c0_i32_1 = arith.constant 0 : i32
    return %c0_i32, %c0_i32_0 : i32, i32
  }
  func.func @transform_3(%arg0: i32) -> (i32, i32) {
    %c0_i32 = arith.constant 0 : i32
    %c0_i32_0 = arith.constant 0 : i32
    %c0_i32_1 = arith.constant 0 : i32
    return %c0_i32, %c0_i32_0 : i32, i32
  }
  func.func @transform_4(%arg0: i32) -> (i32, i32) {
    %c0_i32 = arith.constant 0 : i32
    %c0_i32_0 = arith.constant 0 : i32
    return %arg0, %c0_i32 : i32, i32
  }
}

</mosaic_0001>

<llo_original>
// kernel: tpu_custom_call.1
$region0: #{tpu_custom_call.1}
  #allocation0 [shape = 'u32[]', space=smem, size = 0x4, offset = 0x4, fixed_abs, tag = 'smem constant byte address 0x4 - core index']
  #allocation1 [shape = 'u32[144,128]{1,0:T(1,128)}', space=vmem, size = 0x12000, scoped, tag = 'internal scratch']
  %s0 = inlined_call_operand.vmem [shape: f32[2,8,32], index: 0, kind: input, shape index: {}]
  %s1 = inlined_call_operand.vmem [shape: f32[32,16], index: 1, kind: input, shape index: {}]
  %s2 = inlined_call_operand.vmem [shape: f32[1,16], index: 2, kind: input, shape index: {}]
  %s3 = inlined_call_operand.vmem [shape: f32[1,16], index: 3, kind: input, shape index: {}]
  %s4 = inlined_call_operand.hbm [shape: f32[2,32], index: 4, kind: output, shape index: {}]
  %s5 = sld [smem:[#allocation0]]
  $region26: #{tpu_custom_call.1} parent=0
    _
  %s7 = ssub.s32 1, %s5
  %s8 = scalar_select 0, %s7, %s5
  $region1: #{tpu_custom_call.1} parent=0
    #allocation2 [shape = 'u8[1024]{0}', space=vmem, size = 0x400, scoped, tag = 'output window, operand 0, single buffered']
    #allocation3 [shape = 's32[1]{0}', space=sflag, size = 0x4, scoped, tag = 'scoped memory for tpu_custom_call.1']
    %9 = vsyncpa [#allocation3], 0
    // Predicated region
    $region2: #{tpu_custom_call.1} parent=1 // pred_check
      _
    $region3: #{tpu_custom_call.1} parent=1 // pred_check_branch
      %11 = sbr.rel (0) target = $region5
    $region4: #{tpu_custom_call.1} parent=1 // pred_region
      _
    $region5: #{tpu_custom_call.1} parent=1 // pred_fallthru
      _
    // Predicated region
    $region6: #{tpu_custom_call.1} parent=1 // pred_check
      _
    $region7: #{tpu_custom_call.1} parent=1 // pred_check_branch
      %13 = sbr.rel (0) target = $region9
    $region8: #{tpu_custom_call.1} parent=1 // pred_region
      _
    $region9: #{tpu_custom_call.1} parent=1 // pred_fallthru
      _
    // Predicated region
    $region10: #{tpu_custom_call.1} parent=1 // pred_check
      _
    $region11: #{tpu_custom_call.1} parent=1 // pred_check_branch
      %15 = sbr.rel (0) target = $region13
    $region12: #{tpu_custom_call.1} parent=1 // pred_region
      _
    $region13: #{tpu_custom_call.1} parent=1 // pred_fallthru
      _
    // Predicated region
    $region14: #{tpu_custom_call.1} parent=1 // pred_check
      _
    $region15: #{tpu_custom_call.1} parent=1 // pred_check_branch
      %17 = sbr.rel (0) target = $region17
    $region16: #{tpu_custom_call.1} parent=1 // pred_region
      _
    $region17: #{tpu_custom_call.1} parent=1 // pred_fallthru
      _
    %v18 = vld [vmem:[%s0] sm:$0xff]
    %v19 = vld [vmem:[%s0 + $0x8] sm:$0xff]
    %v20 = vld [vmem:[%s1] sm:$0xff]
    %v21 = vld [vmem:[%s1 + $0x8] sm:$0xff]
    %v22 = vld [vmem:[%s1 + $0x10] sm:$0xff]
    %v23 = vld [vmem:[%s1 + $0x18] sm:$0xff]
    %v24 = vld [vmem:[%s2] sm:$0x1]
    %v25 = vld [vmem:[%s3] sm:$0x1]
    %v27 = vlaneseq
    %v28 = vshrl.u32 %v27, 7
    %v29 = vsub.s32 0, %v28
    %v30 = vrot.slane %v24, %v29
    %vm32 = vcmask 261120
    %v34 = vsel %vm32, %v18, 0
    %v37 = vsel %vm32, %v19, 0
    %39 = vmatprep.subr.mxu0 0.0
    %40 = vmatpush1.msra.mxu0 %v20
    %41 = vmatprep.subr.mxu0 0.0
    %42 = vmatpush1.msra.mxu0 %v21
    %43 = vmatprep.subr.mxu0 0.0
    %44 = vmatpush1.msra.mxu0 %v22
    %45 = vmatprep.subr.mxu0 0.0
    %46 = vmatpush1.msra.mxu0 %v23
    %47 = vmatprep.subr.mxu0 0.0
    %48 = vmatpush1.msra.mxu0 0.0
    %49 = vmatprep.subr.mxu0 0.0
    %50 = vmatpush1.msra.mxu0 0.0
    %51 = vmatprep.subr.mxu0 0.0
    %52 = vmatpush1.msra.mxu0 0.0
    %53 = vmatprep.subr.mxu0 0.0
    %54 = vmatpush1.msra.mxu0 0.0
    %55 = vmatprep.subr.mxu0 0.0
    %56 = vmatpush1.msra.mxu0 0.0
    %57 = vmatprep.subr.mxu0 0.0
    %58 = vmatpush1.msra.mxu0 0.0
    %59 = vmatprep.subr.mxu0 0.0
    %60 = vmatpush1.msra.mxu0 0.0
    %61 = vmatprep.subr.mxu0 0.0
    %62 = vmatpush1.msra.mxu0 0.0
    %63 = vmatprep.subr.mxu0 0.0
    %64 = vmatpush1.msra.mxu0 0.0
    %65 = vmatprep.subr.mxu0 0.0
    %66 = vmatpush1.msra.mxu0 0.0
    %67 = vmatprep.subr.mxu0 0.0
    %68 = vmatpush1.msra.mxu0 0.0
    %69 = vmatprep.subr.mxu0 0.0
    %70 = vmatpush1.msra.mxu0 0.0
    %71 = vmatprep.subr.mxu0 0.0
    %72 = vmatpush1.msra.mxu0 0.0
    %73 = vmatprep.subr.mxu0 0.0
    %74 = vmatpush1.msra.mxu0 0.0
    %75 = vmatprep.subr.mxu0 0.0
    %76 = vmatpush1.msra.mxu0 0.0
    %77 = vmatprep.subr.mxu0 0.0
    %78 = vmatpush1.msra.mxu0 0.0
    %79 = vmatprep.subr.mxu0 0.0
    %80 = vmatpush1.msra.mxu0 0.0
    %81 = vmatprep.subr.mxu0 0.0
    %82 = vmatpush1.msra.mxu0 0.0
    %83 = vmatprep.subr.mxu0 0.0
    %84 = vmatpush1.msra.mxu0 0.0
    %85 = vmatprep.subr.mxu0 0.0
    %86 = vmatpush1.msra.mxu0 0.0
    %87 = vmatprep.subr.mxu0 0.0
    %88 = vmatpush1.msra.mxu0 0.0
    %89 = vmatprep.subr.mxu0 0.0
    %90 = vmatpush1.msra.mxu0 0.0
    %91 = vmatprep.subr.mxu0 0.0
    %92 = vmatpush1.msra.mxu0 0.0
    %93 = vmatprep.subr.mxu0 0.0
    %94 = vmatpush1.msra.mxu0 0.0
    %95 = vmatprep.subr.mxu0 0.0
    %96 = vmatpush1.msra.mxu0 0.0
    %97 = vmatprep.subr.mxu0 0.0
    %98 = vmatpush1.msra.mxu0 0.0
    %99 = vmatprep.subr.mxu0 0.0
    %100 = vmatpush1.msra.mxu0 0.0
    %101 = vmatprep.subr.mxu0 0.0
    %102 = vmatpush1.msra.mxu0 0.0
    %103 = vmatprep.mubr.f32.mxu0 0.0
    %104 = vmatmul.mubr.f32.gmra.mrb[0].mxu0 %v34
    %v105 = vpop.f32.mrb[0].mxu0
    %v106 = vadd.f32 %v30, %v105
    %v107 = vpop.f32.mrb[0].mxu0
    %108 = vmatprep.mubr.f32.mxu0 0.0
    %109 = vmatmul.mubr.f32.gmra.mrb[0].mxu0 %v37
    %v110 = vpop.f32.mrb[0].mxu0
    %v111 = vadd.f32 %v30, %v110
    %v112 = vpop.f32.mrb[0].mxu0
    %113 = vdwg.mxu0
    %v114 = vtanh.pop %v106
    %v115 = vtanh.pop %v111
    %v117 = vlaneseq
    %v118 = vshrl.u32 %v117, 7
    %v119 = vsub.s32 0, %v118
    %v120 = vrot.slane %v25, %v119
    %v122 = vmul.f32 %v114, %v120
    %v123 = vmul.f32 %v115, %v120
    %vm124 = vcmask 130048
    %v125 = vsel %vm124, %v122, 0.0
    %126 = vadd.xlane.f32.xlu0 %v125
    %v127 = vpop.xlane.xlu0 %126
    %v128 = vsel %vm124, %v123, 0.0
    %129 = vadd.xlane.f32.xlu0 %v128
    %v130 = vpop.xlane.xlu0 %129
    %v133 = vlaneseq
    %v134 = vand.u32 %v133, 127
    %v135 = vlaneseq
    %v136 = vshrl.u32 %v135, 7
    %v137 = vsub.s32 %v134, %v136
    %v138 = vrot.slane %v127, %v137
    %v139 = vlaneseq
    %v140 = vshrl.u32 %v139, 7
    %v141 = vsub.s32 %v134, %v140
    %v142 = vrot.slane %v130, %v141
    %vm143 = vcmask 1041409
    %v144 = vsel %vm143, %v142, %v138
    %vm146 = vcmask 58368
    %v147 = vsel %vm146, %v144, -inf
    %148 = vmax.xlane.f32.xlu0 %v147
    %v149 = vpop.xlane.xlu0 %148
    %v151 = vlaneseq
    %v152 = vshrl.u32 %v151, 7
    %v153 = vsub.s32 0, %v152
    %v154 = vrot.slane %v149, %v153
    %v155 = vlaneseq
    %v156 = vshrl.u32 %v155, 7
    %v157 = vsub.s32 1, %v156
    %v158 = vrot.slane %v149, %v157
    %v161 = vsub.f32 %v127, %v154
    %v162 = vsub.f32 %v130, %v158
    %v163 = vmul.f32 %v161, 1.442695
    %v164 = vpow.pop %v163
    %v165 = vmul.f32 %v162, 1.442695
    %v166 = vpow.pop %v165
    %169 = vset.pattern.permute.xlu0 0
    %170 = vperm.xlu0 %169, %v164
    %v171 = vpop.permute.xlu0 %170
    %172 = vset.pattern.permute.xlu0 0
    %173 = vperm.xlu0 %172, %v166
    %v174 = vpop.permute.xlu0 %173
    %v175 = vlaneseq
    %v176 = vshrl.u32 %v175, 7
    %v177 = vsub.s32 %v134, %v176
    %v178 = vrot.slane %v171, %v177
    %v179 = vlaneseq
    %v180 = vshrl.u32 %v179, 7
    %v181 = vsub.s32 %v134, %v180
    %v182 = vrot.slane %v174, %v181
    %v183 = vsel %vm143, %v182, %v178
    %v185 = vsel %vm146, %v183, 0.0
    %186 = vadd.xlane.f32.xlu0 %v185
    %v187 = vpop.xlane.xlu0 %186
    %v189 = vlaneseq
    %v190 = vshrl.u32 %v189, 7
    %v191 = vsub.s32 0, %v190
    %v192 = vrot.slane %v187, %v191
    %v193 = vlaneseq
    %v194 = vshrl.u32 %v193, 7
    %v195 = vsub.s32 1, %v194
    %v196 = vrot.slane %v187, %v195
    %v199 = vrcp.pop %v192
    %v200 = vmul.f32 %v164, %v199
    %v201 = vrcp.pop %v196
    %v202 = vmul.f32 %v166, %v201
    %204 = vset.pattern.permute.xlu0 0
    %205 = vperm.xlu0 %204, %v200
    %v206 = vpop.permute.xlu0 %205
    %209 = vset.pattern.permute.xlu0 0
    %210 = vperm.xlu0 %209, %v202
    %v211 = vpop.permute.xlu0 %210
    %v213 = vmul.f32 %v18, %v206
    %v214 = vmul.f32 %v19, %v211
    %v215 = vsel %vm32, %v213, 0.0
    %v216 = vrot.slane %v215, 4
    %v217 = vadd.f32 %v215, %v216
    %v218 = vrot.slane %v217, 2
    %v219 = vadd.f32 %v217, %v218
    %v220 = vrot.slane %v219, 1
    %v221 = vadd.f32 %v219, %v220
    %v222 = vsel %vm32, %v214, 0.0
    %v223 = vrot.slane %v222, 4
    %v224 = vadd.f32 %v222, %v223
    %v225 = vrot.slane %v224, 2
    %v226 = vadd.f32 %v224, %v225
    %v227 = vrot.slane %v226, 1
    %v228 = vadd.f32 %v226, %v227
    %v231 = vsel %vm143, %v228, %v221
    %vm233 = vcmask 254976
    %234 = vst.msk [vmem:[#allocation2] sm:$0x3] %vm233, %v231
    // Predicated region
    $region18: #{tpu_custom_call.1} parent=1 // pred_check
      _
    $region19: #{tpu_custom_call.1} parent=1 // pred_check_branch
      %236 = sbr.rel (0) target = $region21
    $region20: #{tpu_custom_call.1} parent=1 // pred_region
      %s238 = ssub.s32 32, 32
      %239 = vsyncadd [#allocation3], %s238
      %s241 = sshll.u32 [#allocation2], 4
      %s242 = int_to_ptr.vmem [resolvable:$true] %s241
      %244 = dma.vmem_to_hbm [thread:$0]  %s242, 32, %s4, [#allocation3]
    $region21: #{tpu_custom_call.1} parent=1 // pred_fallthru
      _
    // Predicated region
    $region22: #{tpu_custom_call.1} parent=1 // pred_check
      _
    $region23: #{tpu_custom_call.1} parent=1 // pred_check_branch
      %246 = sbr.rel (0) target = $region25
    $region24: #{tpu_custom_call.1} parent=1 // pred_region
      %247 = dma.done [#allocation3], 32
    $region25: #{tpu_custom_call.1} parent=1 // pred_fallthru
      _
    %248 = vsyncpa [#allocation3], 1

</llo_original>
